<compile_context>
chip_gen: v6e
topology: v6e:2x2x1
jax: 0.10.0
libtpu: 0.0.40
codegen_flags: <defaults>
</compile_context>

<pallas_src>
import math

import jax
import jax.numpy as jnp
from jax.experimental import pallas as pl
from jax.experimental.pallas import tpu as pltpu


def _round_up(v: int, m: int) -> int:
    return (v + m - 1) // m * m


# ---------------------------------------------------------------------------
# Fused Decoder kernel
#   out = leaky_relu(adj @ (leaky_relu(adj @ (x @ W1) + b1) @ W2) + b2)
# grid = (layer, i, k); layer is the slowest axis, so all of layer 0 finishes
# (filling the s2 scratch) before layer 1 starts reading it.
# ---------------------------------------------------------------------------
def _decoder_fused_kernel(x_ref, adj_ref, w1_ref, b1_ref, w2_ref, b2_ref,
                          o_ref, s1_ref, s2_ref, acc1_ref, acc2_ref):
    layer = pl.program_id(0)
    i = pl.program_id(1)
    k = pl.program_id(2)
    n_k = pl.num_programs(2)
    tm, tk = adj_ref.shape

    # One-shot prologue on the very first grid step: s1 = x @ W1 (kept bf16).
    @pl.when((layer == 0) & (i == 0) & (k == 0))
    def _():
        s1 = jnp.dot(x_ref[...], w1_ref[...],
                     preferred_element_type=jnp.float32)
        s1_ref[...] = s1.astype(s1_ref.dtype)

    # Zero the f32 accumulators at the start of every contraction.
    @pl.when(k == 0)
    def _():
        acc1_ref[...] = jnp.zeros_like(acc1_ref)
        acc2_ref[...] = jnp.zeros_like(acc2_ref)

    adj_blk = adj_ref[...]                              # (tm, tk) bf16 tile
    k_off = pl.multiple_of(k * tk, tk)

    @pl.when(layer == 0)                                # gc1: adj @ s1
    def _():
        s_blk = s1_ref[pl.ds(k_off, tk), :]
        acc1_ref[...] += jnp.dot(adj_blk, s_blk,
                                 preferred_element_type=jnp.float32)

    @pl.when(layer == 1)                                # gc2: adj @ s2
    def _():
        s_blk = s2_ref[pl.ds(k_off, tk), :]
        acc2_ref[...] += jnp.dot(adj_blk, s_blk,
                                 preferred_element_type=jnp.float32)

    # Layer-0 finalize: bias + LeakyReLU(0.25) (+ dropout == identity) and
    # this row block's layer-1 support s2 = z @ W2, kept resident in VMEM.
    @pl.when((layer == 0) & (k == n_k - 1))
    def _():
        z_blk = acc1_ref[...] + b1_ref[...]
        z_blk = jnp.where(z_blk >= 0.0, z_blk, 0.25 * z_blk)
        s2_blk = jnp.dot(z_blk.astype(s2_ref.dtype), w2_ref[...],
                         preferred_element_type=jnp.float32)
        i_off = pl.multiple_of(i * tm, tm)
        s2_ref[pl.ds(i_off, tm), :] = s2_blk.astype(s2_ref.dtype)
        # Give the (not-yet-final) output block a defined value; the layer-1
        # revisit of this block overwrites it with the real result.
        o_ref[...] = jnp.zeros_like(o_ref)

    # Layer-1 finalize: bias + LeakyReLU(0.25) -> kernel output.
    @pl.when((layer == 1) & (k == n_k - 1))
    def _():
        out = acc2_ref[...] + b2_ref[...]
        o_ref[...] = jnp.where(out >= 0.0, out, 0.25 * out)


# ---------------------------------------------------------------------------
# Wrapper
# ---------------------------------------------------------------------------
def _default_tiles():
    kind = ""
    try:
        kind = jax.devices()[0].device_kind.lower()
    except Exception:
        pass
    if "v5 lite" in kind or "v5e" in kind or "v5lite" in kind:
        return 128, 256          # v5e: 4x128^2 MXU, 16 MiB scoped-VMEM default
    return 256, 512              # v6e / v7x: 2x256^2 MXU


def _pad_cast(a, rows, cols, dtype):
    a = a.astype(dtype)
    pr, pc = rows - a.shape[0], cols - a.shape[1]
    if pr or pc:
        a = jnp.pad(a, ((0, pr), (0, pc)))
    return a


def decoder_forward(x, adj, w1, b1, w2, b2, *, tm=None, tk=None):
    n, f_in = x.shape
    f_hid = w1.shape[1]
    f_out = w2.shape[1]

    tm_d, tk_d = _default_tiles()
    tm = tm_d if tm is None else tm
    tk = tk_d if tk is None else tk

    f_in_p = _round_up(f_in, 128)
    f_hid_p = _round_up(f_hid, 128)
    f_out_p = _round_up(f_out, 128)

    n8 = _round_up(n, 8)
    if n8 <= min(tm, tk):
        # Small graph: a single block covers everything (grid = (2, 1, 1)).
        tm = tk = n_p = n8
    else:
        n_p = _round_up(n, math.lcm(tm, tk))

    # bf16 operands for the MXU (halves HBM bytes for adj); biases stay f32.
    # Zero-padding is applied only when shapes are not already tile-aligned
    # (exact math: padded adj columns are zero, so padded z/s2 rows cannot
    # leak into real outputs).
    bf16 = jnp.bfloat16
    xp = _pad_cast(x, n_p, f_in_p, bf16)
    adjp = _pad_cast(adj, n_p, n_p, bf16)
    w1p = _pad_cast(w1, f_in_p, f_hid_p, bf16)
    w2p = _pad_cast(w2, f_hid_p, f_out_p, bf16)
    b1p = _pad_cast(b1.reshape(1, -1), 1, f_hid_p, jnp.float32)
    b2p = _pad_cast(b2.reshape(1, -1), 1, f_out_p, jnp.float32)

    n_i = n_p // tm
    n_k = n_p // tk

    flops = (2 * n_p * f_in_p * f_hid_p            # s1 = x @ W1
             + 2 * n_p * n_p * f_hid_p             # adj @ s1
             + 2 * n_p * f_hid_p * f_out_p         # s2 = z @ W2
             + 2 * n_p * n_p * f_out_p)            # adj @ s2
    bytes_accessed = (2 * adjp.nbytes + xp.nbytes + w1p.nbytes + w2p.nbytes
                      + b1p.nbytes + b2p.nbytes + n_p * f_out_p * 4)

    grid_spec = pltpu.PrefetchScalarGridSpec(
        num_scalar_prefetch=0,
        grid=(2, n_i, n_k),
        in_specs=[
            pl.BlockSpec((n_p, f_in_p), lambda l, i, k: (0, 0)),     # x (resident)
            pl.BlockSpec((tm, tk), lambda l, i, k: (i, k)),          # adj (streamed)
            pl.BlockSpec((f_in_p, f_hid_p), lambda l, i, k: (0, 0)),  # W1
            pl.BlockSpec((1, f_hid_p), lambda l, i, k: (0, 0)),       # b1
            pl.BlockSpec((f_hid_p, f_out_p), lambda l, i, k: (0, 0)),  # W2
            pl.BlockSpec((1, f_out_p), lambda l, i, k: (0, 0)),       # b2
        ],
        out_specs=pl.BlockSpec((tm, f_out_p), lambda l, i, k: (i, 0)),
        scratch_shapes=[
            pltpu.VMEM((n_p, f_hid_p), bf16),        # s1 = x @ W1
            pltpu.VMEM((n_p, f_out_p), bf16),        # s2 = z @ W2
            pltpu.VMEM((tm, f_hid_p), jnp.float32),  # gc1 accumulator
            pltpu.VMEM((tm, f_out_p), jnp.float32),  # gc2 accumulator
        ],
    )

    out_p = pl.pallas_call(
        _decoder_fused_kernel,
        out_shape=jax.ShapeDtypeStruct((n_p, f_out_p), jnp.float32),
        grid_spec=grid_spec,
        compiler_params=pltpu.CompilerParams(
            dimension_semantics=("arbitrary", "arbitrary", "arbitrary"),
        ),
        cost_estimate=pl.CostEstimate(
            flops=flops, transcendentals=0, bytes_accessed=bytes_accessed),
    )(xp, adjp, w1p, b1p, w2p, b2p)

    return out_p[:n, :f_out]


# ---------------------------------------------------------------------------
# Pure-JAX reference mirroring the kernel's bf16-operand / f32-accum math
# ---------------------------------------------------------------------------
def decoder_reference(x, adj, w1, b1, w2, b2):
    bf16, f32 = jnp.bfloat16, jnp.float32
    xb, ab = x.astype(bf16), adj.astype(bf16)
    w1b, w2b = w1.astype(bf16), w2.astype(bf16)
    s1 = jnp.dot(xb, w1b, preferred_element_type=f32).astype(bf16)
    z = jnp.dot(ab, s1, preferred_element_type=f32) + b1
    z = jnp.where(z >= 0.0, z, 0.25 * z)
    s2 = jnp.dot(z.astype(bf16), w2b, preferred_element_type=f32).astype(bf16)
    out = jnp.dot(ab, s2, preferred_element_type=f32) + b2
    return jnp.where(out >= 0.0, out, 0.25 * out)


# ---------------------------------------------------------------------------
# Parameter init (mirrors nn.init.xavier_normal_ + zero bias)
# ---------------------------------------------------------------------------
def xavier_normal(key, fan_in, fan_out):
    std = math.sqrt(2.0 / (fan_in + fan_out))
    return std * jax.random.normal(key, (fan_in, fan_out), dtype=jnp.float32)


def init_decoder_params(key, in_channels, out_channels):
    k1, k2 = jax.random.split(key)
    return {
        "w1": xavier_normal(k1, in_channels, in_channels * 2),
        "b1": jnp.zeros((in_channels * 2,), jnp.float32),
        "w2": xavier_normal(k2, in_channels * 2, out_channels),
        "b2": jnp.zeros((out_channels,), jnp.float32),
    }


def _make_graph(key, n, f_in):
    kx, ka = jax.random.split(key)
    x = jax.random.normal(kx, (n, f_in), dtype=jnp.float32)
    a = jax.random.uniform(ka, (n, n), dtype=jnp.float32)
    adj = (a > 0.5).astype(jnp.float32) + jnp.eye(n, dtype=jnp.float32)
    adj = adj / jnp.sum(adj, axis=1, keepdims=True)   # dense row-normalized
    return x, adj


if __name__ == "__main__":
    key = jax.random.PRNGKey(0)
    k_param, k_g1, k_g2 = jax.random.split(key, 3)

    # --- test 1: small graph (single-block path) ---------------------------
    n1, cin1, cout1 = 8, 16, 16
    p1 = init_decoder_params(k_param, cin1, cout1)
    x1, adj1 = _make_graph(k_g1, n1, cin1)
    out1 = decoder_forward(x1, adj1, p1["w1"], p1["b1"], p1["w2"], p1["b2"])
    jax.block_until_ready(out1)
    ref1 = decoder_reference(x1, adj1, p1["w1"], p1["b1"], p1["w2"], p1["b2"])
    assert out1.shape == (n1, cout1), "shape mismatch (test 1)"
    assert jnp.allclose(out1, ref1, atol=1e-2, rtol=1e-2), "mismatch (test 1)"

    # --- test 2: tiled path (row + contraction blocks, ragged N padded) ----
    n2, cin2, cout2 = 300, 16, 24
    p2 = init_decoder_params(k_param, cin2, cout2)
    x2, adj2 = _make_graph(k_g2, n2, cin2)
    out2 = decoder_forward(x2, adj2, p2["w1"], p2["b1"], p2["w2"], p2["b2"],
                           tm=128, tk=128)
    jax.block_until_ready(out2)
    ref2 = decoder_reference(x2, adj2, p2["w1"], p2["b1"], p2["w2"], p2["b2"])
    assert out2.shape == (n2, cout2), "shape mismatch (test 2)"
    assert jnp.allclose(out2, ref2, atol=1e-2, rtol=1e-2), "mismatch (test 2)"

    print("KERNEL_OK")
</pallas_src>

<mosaic_0001>
module attributes {stable_mosaic.version = 11 : i64} {
  func.func @_decoder_fused_kernel(%arg0: i32, %arg1: i32, %arg2: i32, %arg3: memref<8x128xbf16, #tpu.memory_space<vmem>>, %arg4: memref<8x8xbf16, #tpu.memory_space<vmem>>, %arg5: memref<128x128xbf16, #tpu.memory_space<vmem>>, %arg6: memref<1x128xf32, #tpu.memory_space<vmem>>, %arg7: memref<128x128xbf16, #tpu.memory_space<vmem>>, %arg8: memref<1x128xf32, #tpu.memory_space<vmem>>, %arg9: memref<8x128xf32, #tpu.memory_space<vmem>>, %arg10: memref<8x128xbf16, #tpu.memory_space<vmem>>, %arg11: memref<8x128xbf16, #tpu.memory_space<vmem>>, %arg12: memref<8x128xf32, #tpu.memory_space<vmem>>, %arg13: memref<8x128xf32, #tpu.memory_space<vmem>>) attributes {dimension_semantics = [#tpu.dimension_semantics<arbitrary>, #tpu.dimension_semantics<arbitrary>, #tpu.dimension_semantics<arbitrary>], iteration_bounds = array<i64: 2, 1, 1>, scalar_prefetch = 0 : i64, scratch_operands = 4 : i64, tpu.core_type = #tpu.core_type<tc>, window_params = [{pipeline_mode = #tpu.pipeline_mode<synchronous>, transform_indices = @transform_0, window_bounds = array<i64: 8, 128>}, {transform_indices = @transform_1, window_bounds = array<i64: 8, 8>}, {pipeline_mode = #tpu.pipeline_mode<synchronous>, transform_indices = @transform_2, window_bounds = array<i64: 128, 128>}, {pipeline_mode = #tpu.pipeline_mode<synchronous>, transform_indices = @transform_3, window_bounds = array<i64: 1, 128>}, {pipeline_mode = #tpu.pipeline_mode<synchronous>, transform_indices = @transform_4, window_bounds = array<i64: 128, 128>}, {pipeline_mode = #tpu.pipeline_mode<synchronous>, transform_indices = @transform_5, window_bounds = array<i64: 1, 128>}, {transform_indices = @transform_6, window_bounds = array<i64: 8, 128>}]} {
    %c0_i32 = arith.constant 0 : i32
    %0 = arith.cmpi eq, %arg0, %c0_i32 : i32
    %c0_i32_0 = arith.constant 0 : i32
    %1 = arith.cmpi eq, %arg1, %c0_i32_0 : i32
    %2 = arith.andi %0, %1 : i1
    %c0_i32_1 = arith.constant 0 : i32
    %3 = arith.cmpi eq, %arg2, %c0_i32_1 : i32
    %4 = arith.andi %2, %3 : i1
    %5 = arith.extui %4 : i1 to i32
    %c0_i32_2 = arith.constant 0 : i32
    %6 = arith.cmpi ne, %5, %c0_i32_2 : i32
    scf.if %6 {
      %c0_15 = arith.constant 0 : index
      %c0_16 = arith.constant 0 : index
      %29 = vector.load %arg3[%c0_15, %c0_16] : memref<8x128xbf16, #tpu.memory_space<vmem>>, vector<8x128xbf16>
      %c0_17 = arith.constant 0 : index
      %c0_18 = arith.constant 0 : index
      %30 = vector.load %arg5[%c0_17, %c0_18] : memref<128x128xbf16, #tpu.memory_space<vmem>>, vector<128x128xbf16>
      %cst = arith.constant dense<0.000000e+00> : vector<8x128xf32>
      %31 = tpu.matmul %29, %30, %cst {dimension_numbers = #tpu.dot_dimension_numbers<[1], [0], [0], [1], [0, 0, 1, 1], [], []>} : vector<8x128xbf16>, vector<128x128xbf16>, vector<8x128xf32> -> vector<8x128xf32>
      %32 = arith.truncf %31 : vector<8x128xf32> to vector<8x128xbf16>
      %c0_19 = arith.constant 0 : index
      %c0_20 = arith.constant 0 : index
      %33 = vector.load %arg10[%c0_19, %c0_20] : memref<8x128xbf16, #tpu.memory_space<vmem>>, vector<8x128xbf16>
      tpu.vector_store %arg10[%c0_19, %c0_20], %32 {strides = array<i32>} : memref<8x128xbf16, #tpu.memory_space<vmem>>, vector<8x128xbf16>,
    } else {
    }
    %c0_i32_3 = arith.constant 0 : i32
    %7 = arith.cmpi eq, %arg2, %c0_i32_3 : i32
    %8 = arith.extui %7 : i1 to i32
    %c0_i32_4 = arith.constant 0 : i32
    %9 = arith.cmpi ne, %8, %c0_i32_4 : i32
    scf.if %9 {
      %cst = arith.constant 0.000000e+00 : f32
      %29 = vector.broadcast %cst : f32 to vector<8x128xf32>
      %c0_15 = arith.constant 0 : index
      %c0_16 = arith.constant 0 : index
      %30 = vector.load %arg12[%c0_15, %c0_16] : memref<8x128xf32, #tpu.memory_space<vmem>>, vector<8x128xf32>
      tpu.vector_store %arg12[%c0_15, %c0_16], %29 {strides = array<i32>} : memref<8x128xf32, #tpu.memory_space<vmem>>, vector<8x128xf32>,
      %cst_17 = arith.constant 0.000000e+00 : f32
      %31 = vector.broadcast %cst_17 : f32 to vector<8x128xf32>
      %c0_18 = arith.constant 0 : index
      %c0_19 = arith.constant 0 : index
      %32 = vector.load %arg13[%c0_18, %c0_19] : memref<8x128xf32, #tpu.memory_space<vmem>>, vector<8x128xf32>
      tpu.vector_store %arg13[%c0_18, %c0_19], %31 {strides = array<i32>} : memref<8x128xf32, #tpu.memory_space<vmem>>, vector<8x128xf32>,
    } else {
    }
    %c0 = arith.constant 0 : index
    %c0_5 = arith.constant 0 : index
    %10 = vector.load %arg4[%c0, %c0_5] : memref<8x8xbf16, #tpu.memory_space<vmem>>, vector<8x8xbf16>
    %c8_i32 = arith.constant 8 : i32
    %11 = arith.muli %arg2, %c8_i32 : i32
    %12 = tpu.assume_multiple %11, 8 : i32
    %c0_i32_6 = arith.constant 0 : i32
    %13 = arith.cmpi eq, %arg0, %c0_i32_6 : i32
    %14 = arith.extui %13 : i1 to i32
    %c0_i32_7 = arith.constant 0 : i32
    %15 = arith.cmpi ne, %14, %c0_i32_7 : i32
    scf.if %15 {
      %29 = arith.index_cast %12 : i32 to index
      %c0_15 = arith.constant 0 : index
      %30 = vector.load %arg10[%29, %c0_15] : memref<8x128xbf16, #tpu.memory_space<vmem>>, vector<8x128xbf16>
      %c0_16 = arith.constant 0 : index
      %c0_17 = arith.constant 0 : index
      %31 = vector.load %arg12[%c0_16, %c0_17] : memref<8x128xf32, #tpu.memory_space<vmem>>, vector<8x128xf32>
      %cst = arith.constant dense<0.000000e+00> : vector<8x128xf32>
      %32 = tpu.matmul %10, %30, %cst {dimension_numbers = #tpu.dot_dimension_numbers<[1], [0], [0], [1], [0, 0, 1, 1], [], []>} : vector<8x8xbf16>, vector<8x128xbf16>, vector<8x128xf32> -> vector<8x128xf32>
      %33 = arith.addf %31, %32 : vector<8x128xf32>
      %c0_18 = arith.constant 0 : index
      %c0_19 = arith.constant 0 : index
      %34 = vector.load %arg12[%c0_18, %c0_19] : memref<8x128xf32, #tpu.memory_space<vmem>>, vector<8x128xf32>
      tpu.vector_store %arg12[%c0_18, %c0_19], %33 {strides = array<i32>} : memref<8x128xf32, #tpu.memory_space<vmem>>, vector<8x128xf32>,
    } else {
    }
    %c1_i32 = arith.constant 1 : i32
    %16 = arith.cmpi eq, %arg0, %c1_i32 : i32
    %17 = arith.extui %16 : i1 to i32
    %c0_i32_8 = arith.constant 0 : i32
    %18 = arith.cmpi ne, %17, %c0_i32_8 : i32
    scf.if %18 {
      %29 = arith.index_cast %12 : i32 to index
      %c0_15 = arith.constant 0 : index
      %30 = vector.load %arg11[%29, %c0_15] : memref<8x128xbf16, #tpu.memory_space<vmem>>, vector<8x128xbf16>
      %c0_16 = arith.constant 0 : index
      %c0_17 = arith.constant 0 : index
      %31 = vector.load %arg13[%c0_16, %c0_17] : memref<8x128xf32, #tpu.memory_space<vmem>>, vector<8x128xf32>
      %cst = arith.constant dense<0.000000e+00> : vector<8x128xf32>
      %32 = tpu.matmul %10, %30, %cst {dimension_numbers = #tpu.dot_dimension_numbers<[1], [0], [0], [1], [0, 0, 1, 1], [], []>} : vector<8x8xbf16>, vector<8x128xbf16>, vector<8x128xf32> -> vector<8x128xf32>
      %33 = arith.addf %31, %32 : vector<8x128xf32>
      %c0_18 = arith.constant 0 : index
      %c0_19 = arith.constant 0 : index
      %34 = vector.load %arg13[%c0_18, %c0_19] : memref<8x128xf32, #tpu.memory_space<vmem>>, vector<8x128xf32>
      tpu.vector_store %arg13[%c0_18, %c0_19], %33 {strides = array<i32>} : memref<8x128xf32, #tpu.memory_space<vmem>>, vector<8x128xf32>,
    } else {
    }
    %c0_i32_9 = arith.constant 0 : i32
    %19 = arith.cmpi eq, %arg0, %c0_i32_9 : i32
    %c0_i32_10 = arith.constant 0 : i32
    %20 = arith.cmpi eq, %arg2, %c0_i32_10 : i32
    %21 = arith.andi %19, %20 : i1
    %22 = arith.extui %21 : i1 to i32
    %c0_i32_11 = arith.constant 0 : i32
    %23 = arith.cmpi ne, %22, %c0_i32_11 : i32
    scf.if %23 {
      %c0_15 = arith.constant 0 : index
      %c0_16 = arith.constant 0 : index
      %29 = vector.load %arg12[%c0_15, %c0_16] : memref<8x128xf32, #tpu.memory_space<vmem>>, vector<8x128xf32>
      %c0_17 = arith.constant 0 : index
      %c0_18 = arith.constant 0 : index
      %30 = vector.load %arg6[%c0_17, %c0_18] : memref<1x128xf32, #tpu.memory_space<vmem>>, vector<1x128xf32>
      %31 = vector.broadcast %30 : vector<1x128xf32> to vector<8x128xf32>
      %32 = arith.addf %29, %31 : vector<8x128xf32>
      %cst = arith.constant 0.000000e+00 : f32
      %33 = vector.broadcast %cst : f32 to vector<8x128xf32>
      %34 = arith.cmpf oge, %32, %33 : vector<8x128xf32>
      %cst_19 = arith.constant 2.500000e-01 : f32
      %35 = vector.broadcast %cst_19 : f32 to vector<8x128xf32>
      %36 = arith.mulf %35, %32 : vector<8x128xf32>
      %37 = arith.select %34, %32, %36 : vector<8x128xi1>, vector<8x128xf32>
      %38 = arith.truncf %37 : vector<8x128xf32> to vector<8x128xbf16>
      %c0_20 = arith.constant 0 : index
      %c0_21 = arith.constant 0 : index
      %39 = vector.load %arg7[%c0_20, %c0_21] : memref<128x128xbf16, #tpu.memory_space<vmem>>, vector<128x128xbf16>
      %cst_22 = arith.constant dense<0.000000e+00> : vector<8x128xf32>
      %40 = tpu.matmul %38, %39, %cst_22 {dimension_numbers = #tpu.dot_dimension_numbers<[1], [0], [0], [1], [0, 0, 1, 1], [], []>} : vector<8x128xbf16>, vector<128x128xbf16>, vector<8x128xf32> -> vector<8x128xf32>
      %c8_i32_23 = arith.constant 8 : i32
      %41 = arith.muli %arg1, %c8_i32_23 : i32
      %42 = tpu.assume_multiple %41, 8 : i32
      %43 = arith.truncf %40 : vector<8x128xf32> to vector<8x128xbf16>
      %44 = arith.index_cast %42 : i32 to index
      %c0_24 = arith.constant 0 : index
      %45 = vector.load %arg11[%44, %c0_24] : memref<8x128xbf16, #tpu.memory_space<vmem>>, vector<8x128xbf16>
      tpu.vector_store %arg11[%44, %c0_24], %43 {strides = array<i32>} : memref<8x128xbf16, #tpu.memory_space<vmem>>, vector<8x128xbf16>,
      %cst_25 = arith.constant 0.000000e+00 : f32
      %46 = vector.broadcast %cst_25 : f32 to vector<8x128xf32>
      %c0_26 = arith.constant 0 : index
      %c0_27 = arith.constant 0 : index
      %47 = vector.load %arg9[%c0_26, %c0_27] : memref<8x128xf32, #tpu.memory_space<vmem>>, vector<8x128xf32>
      tpu.vector_store %arg9[%c0_26, %c0_27], %46 {strides = array<i32>} : memref<8x128xf32, #tpu.memory_space<vmem>>, vector<8x128xf32>,
    } else {
    }
    %c1_i32_12 = arith.constant 1 : i32
    %24 = arith.cmpi eq, %arg0, %c1_i32_12 : i32
    %c0_i32_13 = arith.constant 0 : i32
    %25 = arith.cmpi eq, %arg2, %c0_i32_13 : i32
    %26 = arith.andi %24, %25 : i1
    %27 = arith.extui %26 : i1 to i32
    %c0_i32_14 = arith.constant 0 : i32
    %28 = arith.cmpi ne, %27, %c0_i32_14 : i32
    scf.if %28 {
      %c0_15 = arith.constant 0 : index
      %c0_16 = arith.constant 0 : index
      %29 = vector.load %arg13[%c0_15, %c0_16] : memref<8x128xf32, #tpu.memory_space<vmem>>, vector<8x128xf32>
      %c0_17 = arith.constant 0 : index
      %c0_18 = arith.constant 0 : index
      %30 = vector.load %arg8[%c0_17, %c0_18] : memref<1x128xf32, #tpu.memory_space<vmem>>, vector<1x128xf32>
      %31 = vector.broadcast %30 : vector<1x128xf32> to vector<8x128xf32>
      %32 = arith.addf %29, %31 : vector<8x128xf32>
      %cst = arith.constant 0.000000e+00 : f32
      %33 = vector.broadcast %cst : f32 to vector<8x128xf32>
      %34 = arith.cmpf oge, %32, %33 : vector<8x128xf32>
      %cst_19 = arith.constant 2.500000e-01 : f32
      %35 = vector.broadcast %cst_19 : f32 to vector<8x128xf32>
      %36 = arith.mulf %35, %32 : vector<8x128xf32>
      %37 = arith.select %34, %32, %36 : vector<8x128xi1>, vector<8x128xf32>
      %c0_20 = arith.constant 0 : index
      %c0_21 = arith.constant 0 : index
      %38 = vector.load %arg9[%c0_20, %c0_21] : memref<8x128xf32, #tpu.memory_space<vmem>>, vector<8x128xf32>
      tpu.vector_store %arg9[%c0_20, %c0_21], %37 {strides = array<i32>} : memref<8x128xf32, #tpu.memory_space<vmem>>, vector<8x128xf32>,
    } else {
    }
    return
  }
  func.func @transform_0(%arg0: i32, %arg1: i32, %arg2: i32) -> (i32, i32) {
    %c0_i32 = arith.constant 0 : i32
    %c0_i32_0 = arith.constant 0 : i32
    %c0_i32_1 = arith.constant 0 : i32
    return %c0_i32, %c0_i32_0 : i32, i32
  }
  func.func @transform_1(%arg0: i32, %arg1: i32, %arg2: i32) -> (i32, i32) {
    %c0_i32 = arith.constant 0 : i32
    return %arg1, %arg2 : i32, i32
  }
  func.func @transform_2(%arg0: i32, %arg1: i32, %arg2: i32) -> (i32, i32) {
    %c0_i32 = arith.constant 0 : i32
    %c0_i32_0 = arith.constant 0 : i32
    %c0_i32_1 = arith.constant 0 : i32
    return %c0_i32, %c0_i32_0 : i32, i32
  }
  func.func @transform_3(%arg0: i32, %arg1: i32, %arg2: i32) -> (i32, i32) {
    %c0_i32 = arith.constant 0 : i32
    %c0_i32_0 = arith.constant 0 : i32
    %c0_i32_1 = arith.constant 0 : i32
    return %c0_i32, %c0_i32_0 : i32, i32
  }
  func.func @transform_4(%arg0: i32, %arg1: i32, %arg2: i32) -> (i32, i32) {
    %c0_i32 = arith.constant 0 : i32
    %c0_i32_0 = arith.constant 0 : i32
    %c0_i32_1 = arith.constant 0 : i32
    return %c0_i32, %c0_i32_0 : i32, i32
  }
  func.func @transform_5(%arg0: i32, %arg1: i32, %arg2: i32) -> (i32, i32) {
    %c0_i32 = arith.constant 0 : i32
    %c0_i32_0 = arith.constant 0 : i32
    %c0_i32_1 = arith.constant 0 : i32
    return %c0_i32, %c0_i32_0 : i32, i32
  }
  func.func @transform_6(%arg0: i32, %arg1: i32, %arg2: i32) -> (i32, i32) {
    %c0_i32 = arith.constant 0 : i32
    %c0_i32_0 = arith.constant 0 : i32
    return %arg1, %c0_i32 : i32, i32
  }
}

</mosaic_0001>

<llo_original>
// kernel: tpu_custom_call.1
$region0: #{tpu_custom_call.1}
  #allocation0 [shape = 'u32[]', space=smem, size = 0x4, offset = 0x4, fixed_abs, tag = 'smem constant byte address 0x4 - core index']
  #allocation1 [shape = 'u32[144,128]{1,0:T(1,128)}', space=vmem, size = 0x12000, scoped, tag = 'internal scratch']
  #allocation2 [shape = 'bf16[8,128]{1,0:T(8,128)(2,1)}', space=vmem, size = 0x800, scoped, tag = 'scratch operand']
  #allocation3 [shape = 'bf16[8,128]{1,0:T(8,128)(2,1)}', space=vmem, size = 0x800, scoped, tag = 'scratch operand']
  #allocation4 [shape = 'f32[8,128]{1,0:T(8,128)}', space=vmem, size = 0x1000, scoped, tag = 'scratch operand']
  #allocation5 [shape = 'f32[8,128]{1,0:T(8,128)}', space=vmem, size = 0x1000, scoped, tag = 'scratch operand']
  %s0 = inlined_call_operand.hbm [shape: bf16[8,128], index: 0, kind: input, shape index: {}]
  %s1 = inlined_call_operand.hbm [shape: bf16[8,8], index: 1, kind: input, shape index: {}]
  %s2 = inlined_call_operand.hbm [shape: bf16[128,128], index: 2, kind: input, shape index: {}]
  %s3 = inlined_call_operand.vmem [shape: f32[1,128], index: 3, kind: input, shape index: {}]
  %s4 = inlined_call_operand.hbm [shape: bf16[128,128], index: 4, kind: input, shape index: {}]
  %s5 = inlined_call_operand.vmem [shape: f32[1,128], index: 5, kind: input, shape index: {}]
  %s6 = inlined_call_operand.hbm [shape: f32[8,128], index: 6, kind: output, shape index: {}]
  %s7 = sld [smem:[#allocation0]]
  $region97: #{tpu_custom_call.1} parent=0
    _
  %s9 = ssub.s32 1, %s7
  %s10 = scalar_select 0, %s9, %s7
  $region1: #{tpu_custom_call.1} parent=0
    #allocation6 [shape = 'u8[2048]{0}', space=vmem, size = 0x800, scoped, tag = 'input window, operand 0, single buffered']
    #allocation7 [shape = 's32[2]{0}', space=sflag, size = 0x8, scoped, tag = 'scoped memory for tpu_custom_call.1']
    #allocation8 [shape = 's32[2]{0}', space=sflag, size = 0x8, scoped, tag = 'scoped memory for tpu_custom_call.1']
    #allocation9 [shape = 'u8[2048]{0}', space=vmem, size = 0x800, scoped, tag = 'input window, operand 1, single buffered']
    #allocation10 [shape = 's32[1]{0}', space=sflag, size = 0x4, scoped, tag = 'scoped memory for tpu_custom_call.1']
    #allocation11 [shape = 'u8[32768]{0}', space=vmem, size = 0x8000, scoped, tag = 'input window, operand 2, single buffered']
    #allocation12 [shape = 'u8[32768]{0}', space=vmem, size = 0x8000, scoped, tag = 'input window, operand 4, single buffered']
    #allocation13 [shape = 's32[1]{0}', space=sflag, size = 0x4, scoped, tag = 'scoped memory for tpu_custom_call.1']
    #allocation14 [shape = 'u8[4096]{0}', space=vmem, size = 0x1000, scoped, tag = 'output window, operand 0, single buffered']
    %11 = vsyncpa [#allocation7], 0
    %12 = vsyncpa [#allocation10], 0
    %13 = vsyncpa [#allocation13], 0
    %14 = vsyncpa [#allocation8], 0
    loop: start=0, step=1, limit=4
    $region2: #{tpu_custom_call.1} parent=1 // loop_pre_header
      _
    $region3: #{tpu_custom_call.1} parent=1 // loop_header
      %s16 = sphi 0, %s20
      %p17 = scmp.ge.s32.totalorder %s16, 4
      %s23 = sphi 0, %s42
      %s24 = sphi 0, %s38
      %s25 = sphi 0, %s34
      %s26 = sphi 0, %s23
      %s27 = sphi 0, %s24
      %s28 = sphi 0, %s25
      %s29 = sphi 0, %s26
      %s30 = sphi 0, %s27
      %s31 = sphi 0, %s28
      %s43 = sphi 0, %s43
      %s45 = sphi 0, %s43
      %s46 = sphi 0, %s45
      %s60 = sphi 0, %s46
      %s68 = sphi 0, %s70
      %s71 = sphi 0, %s68
      %s72 = sphi 0, %s71
      %s88 = sphi 0, %s72
      %s92 = sphi 0, %s92
      %s94 = sphi 0, %s92
      %s95 = sphi 0, %s94
      %s109 = sphi 0, %s95
      %s113 = sphi 0, %s113
      %s115 = sphi 0, %s113
      %s116 = sphi 0, %s115
      %s130 = sphi 0, %s116
      %s134 = sphi 0, %s134
      %s136 = sphi 0, %s134
      %s137 = sphi 0, %s136
      %s151 = sphi 0, %s137
      %s155 = sphi 0, %s155
      %s157 = sphi 0, %s155
      %s158 = sphi 0, %s157
      %s172 = sphi 0, %s158
      %s178 = sphi 0, %s180
      %s181 = sphi 0, %s178
      %s182 = sphi 0, %s181
      %s198 = sphi 0, %s182
    $region4: #{tpu_custom_call.1} parent=1 // loop_header_branch
      %19 = sbr.rel (%p17) target = $region8
    $region5: #{tpu_custom_call.1} parent=1 // loop_body
      %s21 = ssub.s32 %s16, 1
      %s22 = ssub.s32 %s16, 2
      %s32 = sadd.s32 1, %s25
      %p33 = scmp.ge.s32.totalorder %s32, 1
      %s34 = scalar_select %p33, 0, %s32
      %s35 = sadd.s32 1, %s24
      %s36 = scalar_select %p33, %s35, %s24
      %p37 = scmp.ge.s32.totalorder %s36, 1
      %s38 = scalar_select %p37, 0, %s36
      %s39 = sadd.s32 1, %s23
      %s40 = scalar_select %p37, %s39, %s23
      %p41 = scmp.ge.s32.totalorder %s40, 2
      %s42 = scalar_select %p41, 0, %s40
      %s44 = sadd.s32 %s43, 1
      %p47 = scmp.eq.s32.totalorder %s16, 1
      %p48 = scmp.ne.s32.totalorder %s43, %s45
      %p49 = scmp.eq.s32.totalorder %s16, 0
      %p50 = por %p48, %p49
      %p51 = scmp.ne.s32.totalorder %s43, %s45
      %p52 = scmp.eq.s32.totalorder %s21, 1
      %p53 = por %p51, %p52
      %p54 = scmp.ne.s32.totalorder %s45, %s46
      %p55 = scmp.eq.s32.totalorder %s21, 0
      %p56 = por %p54, %p55
      %p57 = scmp.ne.s32.totalorder %s45, %s46
      %p58 = scmp.eq.s32.totalorder %s22, 1
      %p59 = por %p57, %p58
      %p61 = scmp.ne.s32.totalorder %s46, %s60
      %p62 = scmp.eq.s32.totalorder %s22, 0
      %p63 = por %p61, %p62
      %s64 = ssub.s32 %s24, %s38
      %s65 = ssub.s32 %s25, %s34
      %s66 = sor.u32 %s64, %s65
      %p67 = scmp.eq.s32.totalorder %s66, 0
      %s69 = sadd.s32 %s68, 1
      %s70 = scalar_select %p67, %s68, %s69
      %p73 = pneg %p67
      %p74 = scmp.eq.s32.totalorder %s16, 1
      %p75 = por %p73, %p74
      %p76 = scmp.ne.s32.totalorder %s68, %s71
      %p77 = scmp.eq.s32.totalorder %s16, 0
      %p78 = por %p76, %p77
      %p79 = scmp.ne.s32.totalorder %s68, %s71
      %p80 = scmp.eq.s32.totalorder %s21, 1
      %p81 = por %p79, %p80
      %p82 = scmp.ne.s32.totalorder %s71, %s72
      %p83 = scmp.eq.s32.totalorder %s21, 0
      %p84 = por %p82, %p83
      %p85 = scmp.ne.s32.totalorder %s71, %s72
      %p86 = scmp.eq.s32.totalorder %s22, 1
      %p87 = por %p85, %p86
      %p89 = scmp.ne.s32.totalorder %s72, %s88
      %p90 = scmp.eq.s32.totalorder %s22, 0
      %p91 = por %p89, %p90
      %s93 = sadd.s32 %s92, 1
      %p96 = scmp.eq.s32.totalorder %s16, 1
      %p97 = scmp.ne.s32.totalorder %s92, %s94
      %p98 = scmp.eq.s32.totalorder %s16, 0
      %p99 = por %p97, %p98
      %p100 = scmp.ne.s32.totalorder %s92, %s94
      %p101 = scmp.eq.s32.totalorder %s21, 1
      %p102 = por %p100, %p101
      %p103 = scmp.ne.s32.totalorder %s94, %s95
      %p104 = scmp.eq.s32.totalorder %s21, 0
      %p105 = por %p103, %p104
      %p106 = scmp.ne.s32.totalorder %s94, %s95
      %p107 = scmp.eq.s32.totalorder %s22, 1
      %p108 = por %p106, %p107
      %p110 = scmp.ne.s32.totalorder %s95, %s109
      %p111 = scmp.eq.s32.totalorder %s22, 0
      %p112 = por %p110, %p111
      %s114 = sadd.s32 %s113, 1
      %p117 = scmp.eq.s32.totalorder %s16, 1
      %p118 = scmp.ne.s32.totalorder %s113, %s115
      %p119 = scmp.eq.s32.totalorder %s16, 0
      %p120 = por %p118, %p119
      %p121 = scmp.ne.s32.totalorder %s113, %s115
      %p122 = scmp.eq.s32.totalorder %s21, 1
      %p123 = por %p121, %p122
      %p124 = scmp.ne.s32.totalorder %s115, %s116
      %p125 = scmp.eq.s32.totalorder %s21, 0
      %p126 = por %p124, %p125
      %p127 = scmp.ne.s32.totalorder %s115, %s116
      %p128 = scmp.eq.s32.totalorder %s22, 1
      %p129 = por %p127, %p128
      %p131 = scmp.ne.s32.totalorder %s116, %s130
      %p132 = scmp.eq.s32.totalorder %s22, 0
      %p133 = por %p131, %p132
      %s135 = sadd.s32 %s134, 1
      %p138 = scmp.eq.s32.totalorder %s16, 1
      %p139 = scmp.ne.s32.totalorder %s134, %s136
      %p140 = scmp.eq.s32.totalorder %s16, 0
      %p141 = por %p139, %p140
      %p142 = scmp.ne.s32.totalorder %s134, %s136
      %p143 = scmp.eq.s32.totalorder %s21, 1
      %p144 = por %p142, %p143
      %p145 = scmp.ne.s32.totalorder %s136, %s137
      %p146 = scmp.eq.s32.totalorder %s21, 0
      %p147 = por %p145, %p146
      %p148 = scmp.ne.s32.totalorder %s136, %s137
      %p149 = scmp.eq.s32.totalorder %s22, 1
      %p150 = por %p148, %p149
      %p152 = scmp.ne.s32.totalorder %s137, %s151
      %p153 = scmp.eq.s32.totalorder %s22, 0
      %p154 = por %p152, %p153
      %s156 = sadd.s32 %s155, 1
      %p159 = scmp.eq.s32.totalorder %s16, 1
      %p160 = scmp.ne.s32.totalorder %s155, %s157
      %p161 = scmp.eq.s32.totalorder %s16, 0
      %p162 = por %p160, %p161
      %p163 = scmp.ne.s32.totalorder %s155, %s157
      %p164 = scmp.eq.s32.totalorder %s21, 1
      %p165 = por %p163, %p164
      %p166 = scmp.ne.s32.totalorder %s157, %s158
      %p167 = scmp.eq.s32.totalorder %s21, 0
      %p168 = por %p166, %p167
      %p169 = scmp.ne.s32.totalorder %s157, %s158
      %p170 = scmp.eq.s32.totalorder %s22, 1
      %p171 = por %p169, %p170
      %p173 = scmp.ne.s32.totalorder %s158, %s172
      %p174 = scmp.eq.s32.totalorder %s22, 0
      %p175 = por %p173, %p174
      %s176 = ssub.s32 %s24, %s38
      %p177 = scmp.eq.s32.totalorder %s176, 0
      %s179 = sadd.s32 %s178, 1
      %s180 = scalar_select %p177, %s178, %s179
      %p183 = pneg %p177
      %p184 = scmp.eq.s32.totalorder %s16, 1
      %p185 = por %p183, %p184
      %p186 = scmp.ne.s32.totalorder %s178, %s181
      %p187 = scmp.eq.s32.totalorder %s16, 0
      %p188 = por %p186, %p187
      %p189 = scmp.ne.s32.totalorder %s178, %s181
      %p190 = scmp.eq.s32.totalorder %s21, 1
      %p191 = por %p189, %p190
      %p192 = scmp.ne.s32.totalorder %s181, %s182
      %p193 = scmp.eq.s32.totalorder %s21, 0
      %p194 = por %p192, %p193
      %p195 = scmp.ne.s32.totalorder %s181, %s182
      %p196 = scmp.eq.s32.totalorder %s22, 1
      %p197 = por %p195, %p196
      %p199 = scmp.ne.s32.totalorder %s182, %s198
      %p200 = scmp.eq.s32.totalorder %s22, 0
      %p201 = por %p199, %p200
      %p202 = scmp.le.s32.totalorder 1, %s16
      %p203 = scmp.lt.s32.totalorder %s16, 3
      %p204 = pnand %p202, %p203
      %p205 = pneg %p204
      // Predicated region
      $region9: #{tpu_custom_call.1} parent=5 // pred_check
        _
      $region10: #{tpu_custom_call.1} parent=5 // pred_check_branch
        %207 = sbr.rel (%p204) target = $region12
      $region11: #{tpu_custom_call.1} parent=5 // pred_region
        %s208 = ssub.s32 %s16, 1
        // Predicated region
        $region13: #{tpu_custom_call.1} parent=11 // pred_check
          %p209 = pneg %p56
        $region14: #{tpu_custom_call.1} parent=11 // pred_check_branch
          %211 = sbr.rel (%p209) target = $region16
        $region15: #{tpu_custom_call.1} parent=11 // pred_region
          %s213 = ssub.s32 64, 64
          %214 = vsyncadd [#allocation7], %s213
          %s216 = sshll.u32 [#allocation6], 4
          %s217 = int_to_ptr.vmem [resolvable:$true] %s216
          %219 = dma.hbm_to_vmem [thread:$0]  %s0, 64, %s217, [#allocation7]
        $region16: #{tpu_custom_call.1} parent=11 // pred_fallthru
          _
        // Predicated region
        $region17: #{tpu_custom_call.1} parent=11 // pred_check
          %p220 = pneg %p84
        $region18: #{tpu_custom_call.1} parent=11 // pred_check_branch
          %222 = sbr.rel (%p220) target = $region20
        $region19: #{tpu_custom_call.1} parent=11 // pred_region
          %s224 = ssub.s32 64, 64
          %225 = vsyncadd [#allocation10], %s224
          %s226 = sadd.s32 %s28, %s27
          %s227 = smul.addr %s226, 64
          %s228 = scalar_lea.hbm %s1, %s227
          %s230 = sshll.u32 [#allocation9], 4
          %s231 = int_to_ptr.vmem [resolvable:$true] %s230
          %233 = dma.hbm_to_vmem [thread:$0]  %s228, 64, %s231, [#allocation10]
        $region20: #{tpu_custom_call.1} parent=11 // pred_fallthru
          _
        // Predicated region
        $region21: #{tpu_custom_call.1} parent=11 // pred_check
          %p234 = pneg %p105
        $region22: #{tpu_custom_call.1} parent=11 // pred_check_branch
          %236 = sbr.rel (%p234) target = $region24
        $region23: #{tpu_custom_call.1} parent=11 // pred_region
          %s238 = ssub.s32 1024, 1024
          %239 = vsyncadd [#allocation10], %s238
          %s240 = sshll.u32 [#allocation11], 4
          %s241 = int_to_ptr.vmem [resolvable:$true] %s240
          %246 = dma.hbm_to_vmem [thread:$0]  %s2, 1024, %s241, [#allocation10], 64, 64, 4
        $region24: #{tpu_custom_call.1} parent=11 // pred_fallthru
          _
        // Predicated region
        $region25: #{tpu_custom_call.1} parent=11 // pred_check
          %p247 = pneg %p126
        $region26: #{tpu_custom_call.1} parent=11 // pred_check_branch
          %249 = sbr.rel (%p247) target = $region28
        $region27: #{tpu_custom_call.1} parent=11 // pred_region
          _
        $region28: #{tpu_custom_call.1} parent=11 // pred_fallthru
          _
        // Predicated region
        $region29: #{tpu_custom_call.1} parent=11 // pred_check
          %p250 = pneg %p147
        $region30: #{tpu_custom_call.1} parent=11 // pred_check_branch
          %252 = sbr.rel (%p250) target = $region32
        $region31: #{tpu_custom_call.1} parent=11 // pred_region
          %s254 = ssub.s32 1024, 1024
          %255 = vsyncadd [#allocation13], %s254
          %s256 = sshll.u32 [#allocation12], 4
          %s257 = int_to_ptr.vmem [resolvable:$true] %s256
          %262 = dma.hbm_to_vmem [thread:$0]  %s4, 1024, %s257, [#allocation13], 64, 64, 4
        $region32: #{tpu_custom_call.1} parent=11 // pred_fallthru
          _
        // Predicated region
        $region33: #{tpu_custom_call.1} parent=11 // pred_check
          %p263 = pneg %p168
        $region34: #{tpu_custom_call.1} parent=11 // pred_check_branch
          %265 = sbr.rel (%p263) target = $region36
        $region35: #{tpu_custom_call.1} parent=11 // pred_region
          _
        $region36: #{tpu_custom_call.1} parent=11 // pred_fallthru
          _
      $region12: #{tpu_custom_call.1} parent=5 // pred_fallthru
        _
      %p266 = scmp.lt.s32.totalorder %s16, 2
      // Predicated region
      $region37: #{tpu_custom_call.1} parent=5 // pred_check
        %p267 = pneg %p266
      $region38: #{tpu_custom_call.1} parent=5 // pred_check_branch
        %269 = sbr.rel (%p267) target = $region40
      $region39: #{tpu_custom_call.1} parent=5 // pred_region
        _
      $region40: #{tpu_custom_call.1} parent=5 // pred_fallthru
        _
      %p270 = scmp.le.s32.totalorder 1, %s16
      %p271 = scmp.lt.s32.totalorder %s16, 3
      %p272 = pnand %p270, %p271
      %p273 = pneg %p272
      // Predicated region
      $region41: #{tpu_custom_call.1} parent=5 // pred_check
        _
      $region42: #{tpu_custom_call.1} parent=5 // pred_check_branch
        %275 = sbr.rel (%p272) target = $region44
      $region43: #{tpu_custom_call.1} parent=5 // pred_region
        %s276 = ssub.s32 %s16, 1
        // Predicated region
        $region45: #{tpu_custom_call.1} parent=43 // pred_check
          %p277 = pneg %p56
        $region46: #{tpu_custom_call.1} parent=43 // pred_check_branch
          %279 = sbr.rel (%p277) target = $region48
        $region47: #{tpu_custom_call.1} parent=43 // pred_region
          %280 = dma.done [#allocation7], 64
        $region48: #{tpu_custom_call.1} parent=43 // pred_fallthru
          _
        // Predicated region
        $region49: #{tpu_custom_call.1} parent=43 // pred_check
          %p281 = pneg %p84
        $region50: #{tpu_custom_call.1} parent=43 // pred_check_branch
          %283 = sbr.rel (%p281) target = $region52
        $region51: #{tpu_custom_call.1} parent=43 // pred_region
          %284 = dma.done [#allocation10], 64
        $region52: #{tpu_custom_call.1} parent=43 // pred_fallthru
          _
        // Predicated region
        $region53: #{tpu_custom_call.1} parent=43 // pred_check
          %p285 = pneg %p105
        $region54: #{tpu_custom_call.1} parent=43 // pred_check_branch
          %287 = sbr.rel (%p285) target = $region56
        $region55: #{tpu_custom_call.1} parent=43 // pred_region
          %288 = dma.done [#allocation10], 1024
        $region56: #{tpu_custom_call.1} parent=43 // pred_fallthru
          _
        // Predicated region
        $region57: #{tpu_custom_call.1} parent=43 // pred_check
          %p289 = pneg %p147
        $region58: #{tpu_custom_call.1} parent=43 // pred_check_branch
          %291 = sbr.rel (%p289) target = $region60
        $region59: #{tpu_custom_call.1} parent=43 // pred_region
          %292 = dma.done [#allocation13], 1024
        $region60: #{tpu_custom_call.1} parent=43 // pred_fallthru
          _
        %p293 = pneg %p56
        %p294 = pneg %p53
        %p295 = pneg %p84
        %p296 = pneg %p81
        %p297 = pneg %p105
        %p298 = pneg %p102
        %p299 = pneg %p126
        %p300 = pneg %p123
        %p301 = pneg %p147
        %p302 = pneg %p144
        %p303 = pneg %p168
        %p304 = pneg %p165
        %p305 = pneg %p194
        %p306 = pneg %p191
        %p308 = scmp.eq.s32.totalorder %s26, 0
        %p309 = scmp.eq.s32.totalorder %s27, 0
        %p310 = pnand %p308, %p309
        %p311 = pneg %p310
        %p312 = scmp.eq.s32.totalorder %s28, 0
        %p313 = pnand %p311, %p312
        %p314 = pneg %p313
        // Predicated region
        $region61: #{tpu_custom_call.1} parent=43 // pred_check
          _
        $region62: #{tpu_custom_call.1} parent=43 // pred_check_branch
          %316 = sbr.rel (%p313) target = $region64
        $region63: #{tpu_custom_call.1} parent=43 // pred_region
          %v317 = vld [vmem:[#allocation6] sm:$0xf]
          %v318 = vld [vmem:[#allocation11] sm:$0xf]
          %v319 = vld [vmem:[#allocation11 + $0x4] sm:$0xf]
          %v320 = vld [vmem:[#allocation11 + $0x8] sm:$0xf]
          %v321 = vld [vmem:[#allocation11 + $0xc] sm:$0xf]
          %v322 = vld [vmem:[#allocation11 + $0x10] sm:$0xf]
          %v323 = vld [vmem:[#allocation11 + $0x14] sm:$0xf]
          %v324 = vld [vmem:[#allocation11 + $0x18] sm:$0xf]
          %v325 = vld [vmem:[#allocation11 + $0x1c] sm:$0xf]
          %v326 = vld [vmem:[#allocation11 + $0x20] sm:$0xf]
          %v327 = vld [vmem:[#allocation11 + $0x24] sm:$0xf]
          %v328 = vld [vmem:[#allocation11 + $0x28] sm:$0xf]
          %v329 = vld [vmem:[#allocation11 + $0x2c] sm:$0xf]
          %v330 = vld [vmem:[#allocation11 + $0x30] sm:$0xf]
          %v331 = vld [vmem:[#allocation11 + $0x34] sm:$0xf]
          %v332 = vld [vmem:[#allocation11 + $0x38] sm:$0xf]
          %v333 = vld [vmem:[#allocation11 + $0x3c] sm:$0xf]
          %v350 = vunpack.c.l.b16 %v318
          %v351 = vunpack.c.l.b16 %v319
          %v352 = vunpack.c.l.b16 %v320
          %v353 = vunpack.c.l.b16 %v321
          %v354 = vunpack.c.l.b16 %v322
          %v355 = vunpack.c.l.b16 %v323
          %v356 = vunpack.c.l.b16 %v324
          %v357 = vunpack.c.l.b16 %v325
          %v358 = vunpack.c.l.b16 %v326
          %v359 = vunpack.c.l.b16 %v327
          %v360 = vunpack.c.l.b16 %v328
          %v361 = vunpack.c.l.b16 %v329
          %v362 = vunpack.c.l.b16 %v330
          %v363 = vunpack.c.l.b16 %v331
          %v364 = vunpack.c.l.b16 %v332
          %v365 = vunpack.c.l.b16 %v333
          %v366 = vpack.c.b16 %v351, %v350
          %v367 = vpack.c.b16 %v353, %v352
          %v368 = vpack.c.b16 %v355, %v354
          %v369 = vpack.c.b16 %v357, %v356
          %v370 = vpack.c.b16 %v359, %v358
          %v371 = vpack.c.b16 %v361, %v360
          %v372 = vpack.c.b16 %v363, %v362
          %v373 = vpack.c.b16 %v365, %v364
          %382 = vmatprep.subr.bf16.mxu0 0
          %383 = vmatpush1.bf16.msra.mxu0 %v373
          %384 = vmatprep.subr.bf16.mxu0 0
          %385 = vmatpush1.bf16.msra.mxu0 %v372
          %386 = vmatprep.subr.bf16.mxu0 0
          %387 = vmatpush1.bf16.msra.mxu0 %v371
          %388 = vmatprep.subr.bf16.mxu0 0
          %389 = vmatpush1.bf16.msra.mxu0 %v370
          %390 = vmatprep.subr.bf16.mxu0 0
          %391 = vmatpush1.bf16.msra.mxu0 %v369
          %392 = vmatprep.subr.bf16.mxu0 0
          %393 = vmatpush1.bf16.msra.mxu0 %v368
          %394 = vmatprep.subr.bf16.mxu0 0
          %395 = vmatpush1.bf16.msra.mxu0 %v367
          %396 = vmatprep.subr.bf16.mxu0 0
          %397 = vmatpush1.bf16.msra.mxu0 %v366
          %398 = vmatprep.subr.bf16.mxu0 0
          %399 = vmatpush2.bf16.msra.mxu0 0
          %400 = vmatprep.subr.bf16.mxu0 0
          %401 = vmatpush2.bf16.msra.mxu0 0
          %402 = vmatprep.subr.bf16.mxu0 0
          %403 = vmatpush2.bf16.msra.mxu0 0
          %404 = vmatprep.subr.bf16.mxu0 0
          %405 = vmatpush2.bf16.msra.mxu0 0
          %406 = vmatprep.subr.bf16.mxu0 0
          %407 = vmatpush2.bf16.msra.mxu0 0
          %408 = vmatprep.subr.bf16.mxu0 0
          %409 = vmatpush2.bf16.msra.mxu0 0
          %410 = vmatprep.subr.bf16.mxu0 0
          %411 = vmatpush2.bf16.msra.mxu0 0
          %412 = vmatprep.subr.bf16.mxu0 0
          %413 = vmatpush2.bf16.msra.mxu0 0
          %414 = vmatprep.mubr.bf16.mxu0 0
          %415 = vmatmul.mubr.bf16.gmra.mxu0 %v317
          %v416 = vpop.f32.mrf.mxu0
          %v417 = vadd.f32 0.0, %v416
          %v418 = vpop.f32.mrf.mxu0
          %v419 = vpop.f32.mrf.mxu0
          %v420 = vpop.f32.mrf.mxu0
          %421 = vdwg.mxu0
          %v422 = vpack.c.bf16 %v417, %v417
          %423 = vst [vmem:[#allocation2] sm:$0xf] %v422
        $region64: #{tpu_custom_call.1} parent=43 // pred_fallthru
          _
        // Predicated region
        $region65: #{tpu_custom_call.1} parent=43 // pred_check
          %p424 = pneg %p312
        $region66: #{tpu_custom_call.1} parent=43 // pred_check_branch
          %426 = sbr.rel (%p424) target = $region68
        $region67: #{tpu_custom_call.1} parent=43 // pred_region
          %427 = vst [vmem:[#allocation4] sm:$0xff] 0.0
          %428 = vst [vmem:[#allocation5] sm:$0xff] 0.0
        $region68: #{tpu_custom_call.1} parent=43 // pred_fallthru
          _
        %v429 = vld [vmem:[#allocation9] sm:$0xf]
        %s430 = smul.u32 %s28, 8
        // Predicated region
        $region69: #{tpu_custom_call.1} parent=43 // pred_check
          %p431 = pneg %p308
        $region70: #{tpu_custom_call.1} parent=43 // pred_check_branch
          %433 = sbr.rel (%p431) target = $region72
        $region71: #{tpu_custom_call.1} parent=43 // pred_region
          %s434 = sshra.s32 %s430, 3
          %s435 = sand.u32 %s430, 7
          %s436 = smul.addr %s434, 4
          %s437 = scalar_lea.vmem [#allocation2], %s436
          %v438 = vld [vmem:[%s437] sm:$0xf]
          %v439 = vld [vmem:[#allocation4] sm:$0xff]
          %vm440 = vcmask 64512
          %v442 = vsel %vm440, %v429, 0
          %vm444 = vcmask 1043456
          %v446 = vsel %vm444, %v438, 0
          %448 = vmatprep.subr.bf16.mxu0 0
          %449 = vmatpush1.bf16.msra.mxu0 0
          %450 = vmatprep.subr.bf16.mxu0 0
          %451 = vmatpush1.bf16.msra.mxu0 0
          %452 = vmatprep.subr.bf16.mxu0 0
          %453 = vmatpush1.bf16.msra.mxu0 0
          %454 = vmatprep.subr.bf16.mxu0 0
          %455 = vmatpush1.bf16.msra.mxu0 0
          %456 = vmatprep.subr.bf16.mxu0 0
          %457 = vmatpush1.bf16.msra.mxu0 0
          %458 = vmatprep.subr.bf16.mxu0 0
          %459 = vmatpush1.bf16.msra.mxu0 0
          %460 = vmatprep.subr.bf16.mxu0 0
          %461 = vmatpush1.bf16.msra.mxu0 0
          %462 = vmatprep.subr.bf16.mxu0 0
          %463 = vmatpush1.bf16.msra.mxu0 %v446
          %464 = vmatprep.subr.bf16.mxu0 0
          %465 = vmatpush2.bf16.msra.mxu0 0
          %466 = vmatprep.subr.bf16.mxu0 0
          %467 = vmatpush2.bf16.msra.mxu0 0
          %468 = vmatprep.subr.bf16.mxu0 0
          %469 = vmatpush2.bf16.msra.mxu0 0
          %470 = vmatprep.subr.bf16.mxu0 0
          %471 = vmatpush2.bf16.msra.mxu0 0
          %472 = vmatprep.subr.bf16.mxu0 0
          %473 = vmatpush2.bf16.msra.mxu0 0
          %474 = vmatprep.subr.bf16.mxu0 0
          %475 = vmatpush2.bf16.msra.mxu0 0
          %476 = vmatprep.subr.bf16.mxu0 0
          %477 = vmatpush2.bf16.msra.mxu0 0
          %478 = vmatprep.subr.bf16.mxu0 0
          %479 = vmatpush2.bf16.msra.mxu0 0
          %480 = vmatprep.mubr.bf16.mxu0 0
          %481 = vmatmul.mubr.bf16.gmra.mxu0 %v442
          %v482 = vpop.f32.mrf.mxu0
          %v483 = vadd.f32 0.0, %v482
          %v484 = vpop.f32.mrf.mxu0
          %v485 = vpop.f32.mrf.mxu0
          %v486 = vpop.f32.mrf.mxu0
          %487 = vdwg.mxu0
          %v488 = vadd.f32 %v439, %v483
          %489 = vst [vmem:[#allocation4] sm:$0xff] %v488
        $region72: #{tpu_custom_call.1} parent=43 // pred_fallthru
          _
        %p490 = scmp.eq.s32.totalorder %s26, 1
        // Predicated region
        $region73: #{tpu_custom_call.1} parent=43 // pred_check
          %p491 = pneg %p490
        $region74: #{tpu_custom_call.1} parent=43 // pred_check_branch
          %493 = sbr.rel (%p491) target = $region76
        $region75: #{tpu_custom_call.1} parent=43 // pred_region
          %s494 = sshra.s32 %s430, 3
          %s495 = sand.u32 %s430, 7
          %s496 = smul.addr %s494, 4
          %s497 = scalar_lea.vmem [#allocation3], %s496
          %v498 = vld [vmem:[%s497] sm:$0xf]
          %v499 = vld [vmem:[#allocation5] sm:$0xff]
          %vm500 = vcmask 64512
          %v502 = vsel %vm500, %v429, 0
          %vm504 = vcmask 1043456
          %v506 = vsel %vm504, %v498, 0
          %508 = vmatprep.subr.bf16.mxu0 0
          %509 = vmatpush1.bf16.msra.mxu0 0
          %510 = vmatprep.subr.bf16.mxu0 0
          %511 = vmatpush1.bf16.msra.mxu0 0
          %512 = vmatprep.subr.bf16.mxu0 0
          %513 = vmatpush1.bf16.msra.mxu0 0
          %514 = vmatprep.subr.bf16.mxu0 0
          %515 = vmatpush1.bf16.msra.mxu0 0
          %516 = vmatprep.subr.bf16.mxu0 0
          %517 = vmatpush1.bf16.msra.mxu0 0
          %518 = vmatprep.subr.bf16.mxu0 0
          %519 = vmatpush1.bf16.msra.mxu0 0
          %520 = vmatprep.subr.bf16.mxu0 0
          %521 = vmatpush1.bf16.msra.mxu0 0
          %522 = vmatprep.subr.bf16.mxu0 0
          %523 = vmatpush1.bf16.msra.mxu0 %v506
          %524 = vmatprep.subr.bf16.mxu0 0
          %525 = vmatpush2.bf16.msra.mxu0 0
          %526 = vmatprep.subr.bf16.mxu0 0
          %527 = vmatpush2.bf16.msra.mxu0 0
          %528 = vmatprep.subr.bf16.mxu0 0
          %529 = vmatpush2.bf16.msra.mxu0 0
          %530 = vmatprep.subr.bf16.mxu0 0
          %531 = vmatpush2.bf16.msra.mxu0 0
          %532 = vmatprep.subr.bf16.mxu0 0
          %533 = vmatpush2.bf16.msra.mxu0 0
          %534 = vmatprep.subr.bf16.mxu0 0
          %535 = vmatpush2.bf16.msra.mxu0 0
          %536 = vmatprep.subr.bf16.mxu0 0
          %537 = vmatpush2.bf16.msra.mxu0 0
          %538 = vmatprep.subr.bf16.mxu0 0
          %539 = vmatpush2.bf16.msra.mxu0 0
          %540 = vmatprep.mubr.bf16.mxu0 0
          %541 = vmatmul.mubr.bf16.gmra.mxu0 %v502
          %v542 = vpop.f32.mrf.mxu0
          %v543 = vadd.f32 0.0, %v542
          %v544 = vpop.f32.mrf.mxu0
          %v545 = vpop.f32.mrf.mxu0
          %v546 = vpop.f32.mrf.mxu0
          %547 = vdwg.mxu0
          %v548 = vadd.f32 %v499, %v543
          %549 = vst [vmem:[#allocation5] sm:$0xff] %v548
        $region76: #{tpu_custom_call.1} parent=43 // pred_fallthru
          _
        %p550 = pnand %p308, %p312
        %p551 = pneg %p550
        // Predicated region
        $region77: #{tpu_custom_call.1} parent=43 // pred_check
          _
        $region78: #{tpu_custom_call.1} parent=43 // pred_check_branch
          %553 = sbr.rel (%p550) target = $region80
        $region79: #{tpu_custom_call.1} parent=43 // pred_region
          %v554 = vld [vmem:[#allocation4] sm:$0xff]
          %v555 = vld [vmem:[%s3] sm:$0x1]
          %v557 = vlaneseq
          %v558 = vshrl.u32 %v557, 7
          %v559 = vsub.s32 0, %v558
          %v560 = vrot.slane %v555, %v559
          %v562 = vadd.f32 %v554, %v560
          %vm563 = vcmp.ge.f32.partialorder %v562, 0.0
          %v564 = vmul.f32 %v562, 0.25
          %v565 = vsel %vm563, %v562, %v564
          %v566 = vpack.c.bf16 %v565, %v565
          %v567 = vld [vmem:[#allocation12] sm:$0xf]
          %v568 = vld [vmem:[#allocation12 + $0x4] sm:$0xf]
          %v569 = vld [vmem:[#allocation12 + $0x8] sm:$0xf]
          %v570 = vld [vmem:[#allocation12 + $0xc] sm:$0xf]
          %v571 = vld [vmem:[#allocation12 + $0x10] sm:$0xf]
          %v572 = vld [vmem:[#allocation12 + $0x14] sm:$0xf]
          %v573 = vld [vmem:[#allocation12 + $0x18] sm:$0xf]
          %v574 = vld [vmem:[#allocation12 + $0x1c] sm:$0xf]
          %v575 = vld [vmem:[#allocation12 + $0x20] sm:$0xf]
          %v576 = vld [vmem:[#allocation12 + $0x24] sm:$0xf]
          %v577 = vld [vmem:[#allocation12 + $0x28] sm:$0xf]
          %v578 = vld [vmem:[#allocation12 + $0x2c] sm:$0xf]
          %v579 = vld [vmem:[#allocation12 + $0x30] sm:$0xf]
          %v580 = vld [vmem:[#allocation12 + $0x34] sm:$0xf]
          %v581 = vld [vmem:[#allocation12 + $0x38] sm:$0xf]
          %v582 = vld [vmem:[#allocation12 + $0x3c] sm:$0xf]
          %v599 = vunpack.c.l.b16 %v567
          %v600 = vunpack.c.l.b16 %v568
          %v601 = vunpack.c.l.b16 %v569
          %v602 = vunpack.c.l.b16 %v570
          %v603 = vunpack.c.l.b16 %v571
          %v604 = vunpack.c.l.b16 %v572
          %v605 = vunpack.c.l.b16 %v573
          %v606 = vunpack.c.l.b16 %v574
          %v607 = vunpack.c.l.b16 %v575
          %v608 = vunpack.c.l.b16 %v576
          %v609 = vunpack.c.l.b16 %v577
          %v610 = vunpack.c.l.b16 %v578
          %v611 = vunpack.c.l.b16 %v579
          %v612 = vunpack.c.l.b16 %v580
          %v613 = vunpack.c.l.b16 %v581
          %v614 = vunpack.c.l.b16 %v582
          %v615 = vpack.c.b16 %v600, %v599
          %v616 = vpack.c.b16 %v602, %v601
          %v617 = vpack.c.b16 %v604, %v603
          %v618 = vpack.c.b16 %v606, %v605
          %v619 = vpack.c.b16 %v608, %v607
          %v620 = vpack.c.b16 %v610, %v609
          %v621 = vpack.c.b16 %v612, %v611
          %v622 = vpack.c.b16 %v614, %v613
          %631 = vmatprep.subr.bf16.mxu0 0
          %632 = vmatpush1.bf16.msra.mxu0 %v622
          %633 = vmatprep.subr.bf16.mxu0 0
          %634 = vmatpush1.bf16.msra.mxu0 %v621
          %635 = vmatprep.subr.bf16.mxu0 0
          %636 = vmatpush1.bf16.msra.mxu0 %v620
          %637 = vmatprep.subr.bf16.mxu0 0
          %638 = vmatpush1.bf16.msra.mxu0 %v619
          %639 = vmatprep.subr.bf16.mxu0 0
          %640 = vmatpush1.bf16.msra.mxu0 %v618
          %641 = vmatprep.subr.bf16.mxu0 0
          %642 = vmatpush1.bf16.msra.mxu0 %v617
          %643 = vmatprep.subr.bf16.mxu0 0
          %644 = vmatpush1.bf16.msra.mxu0 %v616
          %645 = vmatprep.subr.bf16.mxu0 0
          %646 = vmatpush1.bf16.msra.mxu0 %v615
          %647 = vmatprep.subr.bf16.mxu0 0
          %648 = vmatpush2.bf16.msra.mxu0 0
          %649 = vmatprep.subr.bf16.mxu0 0
          %650 = vmatpush2.bf16.msra.mxu0 0
          %651 = vmatprep.subr.bf16.mxu0 0
          %652 = vmatpush2.bf16.msra.mxu0 0
          %653 = vmatprep.subr.bf16.mxu0 0
          %654 = vmatpush2.bf16.msra.mxu0 0
          %655 = vmatprep.subr.bf16.mxu0 0
          %656 = vmatpush2.bf16.msra.mxu0 0
          %657 = vmatprep.subr.bf16.mxu0 0
          %658 = vmatpush2.bf16.msra.mxu0 0
          %659 = vmatprep.subr.bf16.mxu0 0
          %660 = vmatpush2.bf16.msra.mxu0 0
          %661 = vmatprep.subr.bf16.mxu0 0
          %662 = vmatpush2.bf16.msra.mxu0 0
          %663 = vmatprep.mubr.bf16.mxu0 0
          %664 = vmatmul.mubr.bf16.gmra.mxu0 %v566
          %v665 = vpop.f32.mrf.mxu0
          %v666 = vadd.f32 0.0, %v665
          %v667 = vpop.f32.mrf.mxu0
          %v668 = vpop.f32.mrf.mxu0
          %v669 = vpop.f32.mrf.mxu0
          %670 = vdwg.mxu0
          %s671 = smul.u32 %s27, 8
          %v672 = vpack.c.bf16 %v666, %v666
          %s673 = sshra.s32 %s671, 3
          %s674 = sand.u32 %s671, 7
          %s675 = smul.addr %s673, 4
          %s676 = scalar_lea.vmem [#allocation3], %s675
          %677 = vst [vmem:[%s676] sm:$0xf] %v672
          %678 = vst [vmem:[#allocation14] sm:$0xff] 0.0
        $region80: #{tpu_custom_call.1} parent=43 // pred_fallthru
          _
        %p679 = pnand %p490, %p312
        %p680 = pneg %p679
        // Predicated region
        $region81: #{tpu_custom_call.1} parent=43 // pred_check
          _
        $region82: #{tpu_custom_call.1} parent=43 // pred_check_branch
          %682 = sbr.rel (%p679) target = $region84
        $region83: #{tpu_custom_call.1} parent=43 // pred_region
          %v683 = vld [vmem:[#allocation5] sm:$0xff]
          %v684 = vld [vmem:[%s5] sm:$0x1]
          %v686 = vlaneseq
          %v687 = vshrl.u32 %v686, 7
          %v688 = vsub.s32 0, %v687
          %v689 = vrot.slane %v684, %v688
          %v691 = vadd.f32 %v683, %v689
          %vm692 = vcmp.ge.f32.partialorder %v691, 0.0
          %v693 = vmul.f32 %v691, 0.25
          %v694 = vsel %vm692, %v691, %v693
          %695 = vst [vmem:[#allocation14] sm:$0xff] %v694
        $region84: #{tpu_custom_call.1} parent=43 // pred_fallthru
          _
        // Predicated region
        $region85: #{tpu_custom_call.1} parent=43 // pred_check
          %p696 = pneg %p191
        $region86: #{tpu_custom_call.1} parent=43 // pred_check_branch
          %698 = sbr.rel (%p696) target = $region88
        $region87: #{tpu_custom_call.1} parent=43 // pred_region
          %s700 = ssub.s32 128, 128
          %701 = vsyncadd [#allocation8], %s700
          %s702 = smul.addr %s27, 128
          %s703 = scalar_lea.hbm %s6, %s702
          %s705 = sshll.u32 [#allocation14], 4
          %s706 = int_to_ptr.vmem [resolvable:$true] %s705
          %708 = dma.vmem_to_hbm [thread:$0]  %s706, 128, %s703, [#allocation8]
        $region88: #{tpu_custom_call.1} parent=43 // pred_fallthru
          _
        // Predicated region
        $region89: #{tpu_custom_call.1} parent=43 // pred_check
          %p709 = pneg %p191
        $region90: #{tpu_custom_call.1} parent=43 // pred_check_branch
          %711 = sbr.rel (%p709) target = $region92
        $region91: #{tpu_custom_call.1} parent=43 // pred_region
          %712 = dma.done [#allocation8], 128
        $region92: #{tpu_custom_call.1} parent=43 // pred_fallthru
          _
      $region44: #{tpu_custom_call.1} parent=5 // pred_fallthru
        _
      %p713 = scmp.le.s32.totalorder 2, %s16
      // Predicated region
      $region93: #{tpu_custom_call.1} parent=5 // pred_check
        %p714 = pneg %p713
      $region94: #{tpu_custom_call.1} parent=5 // pred_check_branch
        %716 = sbr.rel (%p714) target = $region96
      $region95: #{tpu_custom_call.1} parent=5 // pred_region
        %s717 = ssub.s32 %s16, 2
      $region96: #{tpu_custom_call.1} parent=5 // pred_fallthru
        _
    $region6: #{tpu_custom_call.1} parent=1 // loop_footer
      %s20 = sadd.s32 1, %s16
    $region7: #{tpu_custom_call.1} parent=1 // loop_footer_branch
      %15 = sbr.rel target = $region3
    $region8: #{tpu_custom_call.1} parent=1 // loop_exit
      _
    %718 = vsyncpa [#allocation7], 1
    %s719 = scalar_lea.sflag [#allocation7], 1
    %720 = vsyncpa %s719, 1
    %721 = vsyncpa [#allocation10], 1
    %722 = vsyncpa [#allocation13], 1
    %723 = vsyncpa [#allocation8], 1
    %s724 = scalar_lea.sflag [#allocation8], 1
    %725 = vsyncpa %s724, 1

</llo_original>
